<compile_context>
chip_gen: v6e
topology: v6e:2x2x1
jax: 0.10.0
libtpu: 0.0.40
codegen_flags: <defaults>
</compile_context>

<pallas_src>
import functools

import jax
import jax.numpy as jnp
from jax.experimental import pallas as pl
from jax.experimental.pallas import tpu as pltpu


def _round_up(x, m):
    return (x + m - 1) // m * m


def _dropout(h, bits, threshold, scale):
    """Inverted dropout via unsigned integer compare.

    bits ~ Uniform[0, 2^32); keep iff bits >= rate * 2^32  =>  P(keep) = 1 - rate.
    """
    keep = bits >= jnp.uint32(threshold)
    return jnp.where(keep, h * jnp.float32(scale), jnp.float32(0.0))


def _mlp_kernel(*refs, use_dropout, threshold, scale):
    if use_dropout:
        (x_ref, w1, b1, w2, b2, w3, b3, w4, b4, r1, r2, r3, out_ref) = refs
    else:
        (x_ref, w1, b1, w2, b2, w3, b3, w4, b4, out_ref) = refs
        r1 = r2 = r3 = None

    # fc1 -> relu -> dropout      (bf16 MXU inputs, f32 accumulation)
    h = jnp.dot(x_ref[...].astype(jnp.bfloat16), w1[...],
                preferred_element_type=jnp.float32)
    h = jnp.maximum(h + b1[...], 0.0)
    if use_dropout:
        h = _dropout(h, r1[...], threshold, scale)

    # fc2 -> relu -> dropout
    h = jnp.dot(h.astype(jnp.bfloat16), w2[...],
                preferred_element_type=jnp.float32)
    h = jnp.maximum(h + b2[...], 0.0)
    if use_dropout:
        h = _dropout(h, r2[...], threshold, scale)

    # fc3 -> relu -> dropout
    h = jnp.dot(h.astype(jnp.bfloat16), w3[...],
                preferred_element_type=jnp.float32)
    h = jnp.maximum(h + b3[...], 0.0)
    if use_dropout:
        h = _dropout(h, r3[...], threshold, scale)

    # fc4 (zero-padded to 128 lanes) -> sigmoid ; lane-dense store
    z = jnp.dot(h.astype(jnp.bfloat16), w4[...],
                preferred_element_type=jnp.float32) + b4[...]
    out_ref[...] = jax.nn.sigmoid(z).astype(out_ref.dtype)


def model_with_dropout_forward(x, params, *, key=None, dropout_rate=0.5,
                               training=True, tile_b=512):
    """Whole MLP forward in one pallas_call, tiled over the batch dimension."""
    batch, n_features = x.shape
    use_dropout = bool(training) and float(dropout_rate) > 0.0

    # ---- batch tiling ----------------------------------------------------
    tile_b = int(min(tile_b, _round_up(max(batch, 1), 8)))
    padded = _round_up(batch, tile_b)
    grid = (padded // tile_b,)
    if padded != batch:
        x = jnp.pad(x, ((0, padded - batch), (0, 0)))

    # ---- parameters: bf16 weights for the MXU, f32 biases, padded fc4 -----
    w1 = params["w1"].astype(jnp.bfloat16)
    w2 = params["w2"].astype(jnp.bfloat16)
    w3 = params["w3"].astype(jnp.bfloat16)
    b1, b2, b3 = params["b1"], params["b2"], params["b3"]
    w4 = jnp.zeros((128, 128), jnp.float32).at[:, :1].set(
        params["w4"]).astype(jnp.bfloat16)
    b4 = jnp.zeros((1, 128), jnp.float32).at[:, :1].set(params["b4"])

    def resident(a):  # whole-array block, pinned in VMEM across all grid steps
        return pl.BlockSpec(a.shape, lambda i: (0, 0))

    in_specs = [pl.BlockSpec((tile_b, n_features), lambda i: (i, 0)),
                resident(w1), resident(b1), resident(w2), resident(b2),
                resident(w3), resident(b3), resident(w4), resident(b4)]
    inputs = [x, w1, b1, w2, b2, w3, b3, w4, b4]

    if use_dropout:
        if key is None:
            key = jax.random.PRNGKey(0)
        k1, k2, k3 = jax.random.split(key, 3)
        bits = [jax.random.bits(k1, (padded, 128), dtype=jnp.uint32),
                jax.random.bits(k2, (padded, 256), dtype=jnp.uint32),
                jax.random.bits(k3, (padded, 128), dtype=jnp.uint32)]
        for r in bits:
            in_specs.append(pl.BlockSpec((tile_b, r.shape[1]), lambda i: (i, 0)))
        inputs += bits
        threshold = min(int(float(dropout_rate) * (2 ** 32)), 2 ** 32 - 1)
        scale = 1.0 / (1.0 - float(dropout_rate))
    else:
        threshold, scale = 0, 1.0

    kernel = functools.partial(_mlp_kernel, use_dropout=use_dropout,
                               threshold=threshold, scale=scale)

    flops = 2 * padded * (n_features * 128 + 128 * 256 + 256 * 128 + 128 * 128)
    bytes_accessed = (sum(int(a.size) * a.dtype.itemsize for a in inputs)
                      + padded * 128 * 4)
    cost = pl.CostEstimate(flops=flops, transcendentals=padded * 128,
                           bytes_accessed=bytes_accessed)

    out = pl.pallas_call(
        kernel,
        out_shape=jax.ShapeDtypeStruct((padded, 128), jnp.float32),
        grid=grid,
        in_specs=in_specs,
        out_specs=pl.BlockSpec((tile_b, 128), lambda i: (i, 0)),
        compiler_params=pltpu.CompilerParams(
            dimension_semantics=("parallel",)),
        cost_estimate=cost,
    )(*inputs)

    # drop batch padding and the fc4 lane padding
    return out[:batch, :1]


def init_params(key, n_features):
    """Shapes match ModelWithDropout.__init__; weights stored as (in, out)."""
    dims = [(n_features, 128), (128, 256), (256, 128), (128, 1)]
    params = {}
    for i, (fan_in, fan_out) in enumerate(dims, start=1):
        key, kw, kb = jax.random.split(key, 3)
        bound = 1.0 / jnp.sqrt(jnp.float32(fan_in))
        params[f"w{i}"] = jax.random.uniform(
            kw, (fan_in, fan_out), jnp.float32, -bound, bound)
        params[f"b{i}"] = jax.random.uniform(
            kb, (1, fan_out), jnp.float32, -bound, bound)
    return params


def _reference_eval(x, params):
    h = jnp.maximum(x @ params["w1"] + params["b1"], 0.0)
    h = jnp.maximum(h @ params["w2"] + params["b2"], 0.0)
    h = jnp.maximum(h @ params["w3"] + params["b3"], 0.0)
    return jax.nn.sigmoid(h @ params["w4"] + params["b4"])


if __name__ == "__main__":
    key = jax.random.PRNGKey(0)
    n_features = 32
    batch = 8

    k_params, k_x, k_drop = jax.random.split(key, 3)
    params = init_params(k_params, n_features)
    x = jax.random.normal(k_x, (batch, n_features), dtype=jnp.float32)

    # Training-mode forward (dropout active, rate=0.5), like PyTorch .train()
    out_train = model_with_dropout_forward(x, params, key=k_drop,
                                           dropout_rate=0.5, training=True)
    jax.block_until_ready(out_train)
    assert out_train.shape == (batch, 1)
    assert bool(jnp.all((out_train >= 0.0) & (out_train <= 1.0)))
    assert bool(jnp.all(jnp.isfinite(out_train)))

    # Eval-mode forward (dropout disabled), checked against a pure-JAX reference
    out_eval = model_with_dropout_forward(x, params, dropout_rate=0.5,
                                          training=False)
    jax.block_until_ready(out_eval)
    assert out_eval.shape == (batch, 1)
    ref = _reference_eval(x, params)
    assert bool(jnp.allclose(out_eval, ref, atol=5e-2))

    print("KERNEL_OK")
</pallas_src>

<mosaic_0001>
module attributes {stable_mosaic.version = 11 : i64} {
  func.func @_mlp_kernel(%arg0: i32, %arg1: memref<8x32xf32, #tpu.memory_space<vmem>>, %arg2: memref<32x128xbf16, #tpu.memory_space<vmem>>, %arg3: memref<1x128xf32, #tpu.memory_space<vmem>>, %arg4: memref<128x256xbf16, #tpu.memory_space<vmem>>, %arg5: memref<1x256xf32, #tpu.memory_space<vmem>>, %arg6: memref<256x128xbf16, #tpu.memory_space<vmem>>, %arg7: memref<1x128xf32, #tpu.memory_space<vmem>>, %arg8: memref<128x128xbf16, #tpu.memory_space<vmem>>, %arg9: memref<1x128xf32, #tpu.memory_space<vmem>>, %arg10: memref<8x128xi32, #tpu.memory_space<vmem>>, %arg11: memref<8x256xi32, #tpu.memory_space<vmem>>, %arg12: memref<8x128xi32, #tpu.memory_space<vmem>>, %arg13: memref<8x128xf32, #tpu.memory_space<vmem>>) attributes {dimension_semantics = [#tpu.dimension_semantics<parallel>], iteration_bounds = array<i64: 1>, scalar_prefetch = 0 : i64, scratch_operands = 0 : i64, tpu.core_type = #tpu.core_type<tc>, window_params = [{transform_indices = @transform_0, window_bounds = array<i64: 8, 32>}, {pipeline_mode = #tpu.pipeline_mode<synchronous>, transform_indices = @transform_1, window_bounds = array<i64: 32, 128>}, {pipeline_mode = #tpu.pipeline_mode<synchronous>, transform_indices = @transform_2, window_bounds = array<i64: 1, 128>}, {pipeline_mode = #tpu.pipeline_mode<synchronous>, transform_indices = @transform_3, window_bounds = array<i64: 128, 256>}, {pipeline_mode = #tpu.pipeline_mode<synchronous>, transform_indices = @transform_4, window_bounds = array<i64: 1, 256>}, {pipeline_mode = #tpu.pipeline_mode<synchronous>, transform_indices = @transform_5, window_bounds = array<i64: 256, 128>}, {pipeline_mode = #tpu.pipeline_mode<synchronous>, transform_indices = @transform_6, window_bounds = array<i64: 1, 128>}, {pipeline_mode = #tpu.pipeline_mode<synchronous>, transform_indices = @transform_7, window_bounds = array<i64: 128, 128>}, {pipeline_mode = #tpu.pipeline_mode<synchronous>, transform_indices = @transform_8, window_bounds = array<i64: 1, 128>}, {transform_indices = @transform_9, window_bounds = array<i64: 8, 128>}, {transform_indices = @transform_10, window_bounds = array<i64: 8, 256>}, {transform_indices = @transform_11, window_bounds = array<i64: 8, 128>}, {transform_indices = @transform_12, window_bounds = array<i64: 8, 128>}]} {
    %c0 = arith.constant 0 : index
    %c0_0 = arith.constant 0 : index
    %0 = vector.load %arg1[%c0, %c0_0] : memref<8x32xf32, #tpu.memory_space<vmem>>, vector<8x32xf32>
    %1 = arith.truncf %0 : vector<8x32xf32> to vector<8x32xbf16>
    %c0_1 = arith.constant 0 : index
    %c0_2 = arith.constant 0 : index
    %2 = vector.load %arg2[%c0_1, %c0_2] : memref<32x128xbf16, #tpu.memory_space<vmem>>, vector<32x128xbf16>
    %cst = arith.constant dense<0.000000e+00> : vector<8x128xf32>
    %3 = tpu.matmul %1, %2, %cst {dimension_numbers = #tpu.dot_dimension_numbers<[1], [0], [0], [1], [0, 0, 1, 1], [], []>} : vector<8x32xbf16>, vector<32x128xbf16>, vector<8x128xf32> -> vector<8x128xf32>
    %c0_3 = arith.constant 0 : index
    %c0_4 = arith.constant 0 : index
    %4 = vector.load %arg3[%c0_3, %c0_4] : memref<1x128xf32, #tpu.memory_space<vmem>>, vector<1x128xf32>
    %5 = vector.broadcast %4 : vector<1x128xf32> to vector<8x128xf32>
    %6 = arith.addf %3, %5 : vector<8x128xf32>
    %cst_5 = arith.constant 0.000000e+00 : f32
    %7 = vector.broadcast %cst_5 : f32 to vector<8x128xf32>
    %8 = arith.maximumf %6, %7 : vector<8x128xf32>
    %c0_6 = arith.constant 0 : index
    %c0_7 = arith.constant 0 : index
    %9 = vector.load %arg10[%c0_6, %c0_7] : memref<8x128xi32, #tpu.memory_space<vmem>>, vector<8x128xi32>
    %c-2147483648_i32 = arith.constant -2147483648 : i32
    %10 = vector.broadcast %c-2147483648_i32 : i32 to vector<8x128xi32>
    %11 = arith.cmpi uge, %9, %10 : vector<8x128xi32>
    %cst_8 = arith.constant 2.000000e+00 : f32
    %12 = vector.broadcast %cst_8 : f32 to vector<8x128xf32>
    %13 = arith.mulf %8, %12 : vector<8x128xf32>
    %cst_9 = arith.constant 0.000000e+00 : f32
    %14 = vector.broadcast %cst_9 : f32 to vector<8x128xf32>
    %15 = arith.select %11, %13, %14 : vector<8x128xi1>, vector<8x128xf32>
    %16 = arith.truncf %15 : vector<8x128xf32> to vector<8x128xbf16>
    %c0_10 = arith.constant 0 : index
    %c0_11 = arith.constant 0 : index
    %17 = vector.load %arg4[%c0_10, %c0_11] : memref<128x256xbf16, #tpu.memory_space<vmem>>, vector<128x256xbf16>
    %cst_12 = arith.constant dense<0.000000e+00> : vector<8x256xf32>
    %18 = tpu.matmul %16, %17, %cst_12 {dimension_numbers = #tpu.dot_dimension_numbers<[1], [0], [0], [1], [0, 0, 1, 1], [], []>} : vector<8x128xbf16>, vector<128x256xbf16>, vector<8x256xf32> -> vector<8x256xf32>
    %c0_13 = arith.constant 0 : index
    %c0_14 = arith.constant 0 : index
    %19 = vector.load %arg5[%c0_13, %c0_14] : memref<1x256xf32, #tpu.memory_space<vmem>>, vector<1x256xf32>
    %20 = vector.broadcast %19 : vector<1x256xf32> to vector<8x256xf32>
    %21 = arith.addf %18, %20 : vector<8x256xf32>
    %cst_15 = arith.constant 0.000000e+00 : f32
    %22 = vector.broadcast %cst_15 : f32 to vector<8x256xf32>
    %23 = arith.maximumf %21, %22 : vector<8x256xf32>
    %c0_16 = arith.constant 0 : index
    %c0_17 = arith.constant 0 : index
    %24 = vector.load %arg11[%c0_16, %c0_17] : memref<8x256xi32, #tpu.memory_space<vmem>>, vector<8x256xi32>
    %c-2147483648_i32_18 = arith.constant -2147483648 : i32
    %25 = vector.broadcast %c-2147483648_i32_18 : i32 to vector<8x256xi32>
    %26 = arith.cmpi uge, %24, %25 : vector<8x256xi32>
    %cst_19 = arith.constant 2.000000e+00 : f32
    %27 = vector.broadcast %cst_19 : f32 to vector<8x256xf32>
    %28 = arith.mulf %23, %27 : vector<8x256xf32>
    %cst_20 = arith.constant 0.000000e+00 : f32
    %29 = vector.broadcast %cst_20 : f32 to vector<8x256xf32>
    %30 = arith.select %26, %28, %29 : vector<8x256xi1>, vector<8x256xf32>
    %31 = arith.truncf %30 : vector<8x256xf32> to vector<8x256xbf16>
    %c0_21 = arith.constant 0 : index
    %c0_22 = arith.constant 0 : index
    %32 = vector.load %arg6[%c0_21, %c0_22] : memref<256x128xbf16, #tpu.memory_space<vmem>>, vector<256x128xbf16>
    %cst_23 = arith.constant dense<0.000000e+00> : vector<8x128xf32>
    %33 = tpu.matmul %31, %32, %cst_23 {dimension_numbers = #tpu.dot_dimension_numbers<[1], [0], [0], [1], [0, 0, 1, 1], [], []>} : vector<8x256xbf16>, vector<256x128xbf16>, vector<8x128xf32> -> vector<8x128xf32>
    %c0_24 = arith.constant 0 : index
    %c0_25 = arith.constant 0 : index
    %34 = vector.load %arg7[%c0_24, %c0_25] : memref<1x128xf32, #tpu.memory_space<vmem>>, vector<1x128xf32>
    %35 = vector.broadcast %34 : vector<1x128xf32> to vector<8x128xf32>
    %36 = arith.addf %33, %35 : vector<8x128xf32>
    %cst_26 = arith.constant 0.000000e+00 : f32
    %37 = vector.broadcast %cst_26 : f32 to vector<8x128xf32>
    %38 = arith.maximumf %36, %37 : vector<8x128xf32>
    %c0_27 = arith.constant 0 : index
    %c0_28 = arith.constant 0 : index
    %39 = vector.load %arg12[%c0_27, %c0_28] : memref<8x128xi32, #tpu.memory_space<vmem>>, vector<8x128xi32>
    %c-2147483648_i32_29 = arith.constant -2147483648 : i32
    %40 = vector.broadcast %c-2147483648_i32_29 : i32 to vector<8x128xi32>
    %41 = arith.cmpi uge, %39, %40 : vector<8x128xi32>
    %cst_30 = arith.constant 2.000000e+00 : f32
    %42 = vector.broadcast %cst_30 : f32 to vector<8x128xf32>
    %43 = arith.mulf %38, %42 : vector<8x128xf32>
    %cst_31 = arith.constant 0.000000e+00 : f32
    %44 = vector.broadcast %cst_31 : f32 to vector<8x128xf32>
    %45 = arith.select %41, %43, %44 : vector<8x128xi1>, vector<8x128xf32>
    %46 = arith.truncf %45 : vector<8x128xf32> to vector<8x128xbf16>
    %c0_32 = arith.constant 0 : index
    %c0_33 = arith.constant 0 : index
    %47 = vector.load %arg8[%c0_32, %c0_33] : memref<128x128xbf16, #tpu.memory_space<vmem>>, vector<128x128xbf16>
    %cst_34 = arith.constant dense<0.000000e+00> : vector<8x128xf32>
    %48 = tpu.matmul %46, %47, %cst_34 {dimension_numbers = #tpu.dot_dimension_numbers<[1], [0], [0], [1], [0, 0, 1, 1], [], []>} : vector<8x128xbf16>, vector<128x128xbf16>, vector<8x128xf32> -> vector<8x128xf32>
    %c0_35 = arith.constant 0 : index
    %c0_36 = arith.constant 0 : index
    %49 = vector.load %arg9[%c0_35, %c0_36] : memref<1x128xf32, #tpu.memory_space<vmem>>, vector<1x128xf32>
    %50 = vector.broadcast %49 : vector<1x128xf32> to vector<8x128xf32>
    %51 = arith.addf %48, %50 : vector<8x128xf32>
    %52 = arith.negf %51 : vector<8x128xf32>
    %53 = math.exp %52 : vector<8x128xf32>
    %cst_37 = arith.constant 1.000000e+00 : f32
    %54 = vector.broadcast %cst_37 : f32 to vector<8x128xf32>
    %55 = arith.addf %54, %53 : vector<8x128xf32>
    %56 = arith.divf %54, %55 : vector<8x128xf32>
    %c0_38 = arith.constant 0 : index
    %c0_39 = arith.constant 0 : index
    %57 = vector.load %arg13[%c0_38, %c0_39] : memref<8x128xf32, #tpu.memory_space<vmem>>, vector<8x128xf32>
    tpu.vector_store %arg13[%c0_38, %c0_39], %56 {strides = array<i32>} : memref<8x128xf32, #tpu.memory_space<vmem>>, vector<8x128xf32>,
    return
  }
  func.func @transform_0(%arg0: i32) -> (i32, i32) {
    %c0_i32 = arith.constant 0 : i32
    %c0_i32_0 = arith.constant 0 : i32
    return %arg0, %c0_i32 : i32, i32
  }
  func.func @transform_1(%arg0: i32) -> (i32, i32) {
    %c0_i32 = arith.constant 0 : i32
    %c0_i32_0 = arith.constant 0 : i32
    %c0_i32_1 = arith.constant 0 : i32
    return %c0_i32, %c0_i32_0 : i32, i32
  }
  func.func @transform_2(%arg0: i32) -> (i32, i32) {
    %c0_i32 = arith.constant 0 : i32
    %c0_i32_0 = arith.constant 0 : i32
    %c0_i32_1 = arith.constant 0 : i32
    return %c0_i32, %c0_i32_0 : i32, i32
  }
  func.func @transform_3(%arg0: i32) -> (i32, i32) {
    %c0_i32 = arith.constant 0 : i32
    %c0_i32_0 = arith.constant 0 : i32
    %c0_i32_1 = arith.constant 0 : i32
    return %c0_i32, %c0_i32_0 : i32, i32
  }
  func.func @transform_4(%arg0: i32) -> (i32, i32) {
    %c0_i32 = arith.constant 0 : i32
    %c0_i32_0 = arith.constant 0 : i32
    %c0_i32_1 = arith.constant 0 : i32
    return %c0_i32, %c0_i32_0 : i32, i32
  }
  func.func @transform_5(%arg0: i32) -> (i32, i32) {
    %c0_i32 = arith.constant 0 : i32
    %c0_i32_0 = arith.constant 0 : i32
    %c0_i32_1 = arith.constant 0 : i32
    return %c0_i32, %c0_i32_0 : i32, i32
  }
  func.func @transform_6(%arg0: i32) -> (i32, i32) {
    %c0_i32 = arith.constant 0 : i32
    %c0_i32_0 = arith.constant 0 : i32
    %c0_i32_1 = arith.constant 0 : i32
    return %c0_i32, %c0_i32_0 : i32, i32
  }
  func.func @transform_7(%arg0: i32) -> (i32, i32) {
    %c0_i32 = arith.constant 0 : i32
    %c0_i32_0 = arith.constant 0 : i32
    %c0_i32_1 = arith.constant 0 : i32
    return %c0_i32, %c0_i32_0 : i32, i32
  }
  func.func @transform_8(%arg0: i32) -> (i32, i32) {
    %c0_i32 = arith.constant 0 : i32
    %c0_i32_0 = arith.constant 0 : i32
    %c0_i32_1 = arith.constant 0 : i32
    return %c0_i32, %c0_i32_0 : i32, i32
  }
  func.func @transform_9(%arg0: i32) -> (i32, i32) {
    %c0_i32 = arith.constant 0 : i32
    %c0_i32_0 = arith.constant 0 : i32
    return %arg0, %c0_i32 : i32, i32
  }
  func.func @transform_10(%arg0: i32) -> (i32, i32) {
    %c0_i32 = arith.constant 0 : i32
    %c0_i32_0 = arith.constant 0 : i32
    return %arg0, %c0_i32 : i32, i32
  }
  func.func @transform_11(%arg0: i32) -> (i32, i32) {
    %c0_i32 = arith.constant 0 : i32
    %c0_i32_0 = arith.constant 0 : i32
    return %arg0, %c0_i32 : i32, i32
  }
  func.func @transform_12(%arg0: i32) -> (i32, i32) {
    %c0_i32 = arith.constant 0 : i32
    %c0_i32_0 = arith.constant 0 : i32
    return %arg0, %c0_i32 : i32, i32
  }
}

</mosaic_0001>

<llo_original>
// kernel: tpu_custom_call.1
$region0: #{tpu_custom_call.1}
  #allocation0 [shape = 'u32[]', space=smem, size = 0x4, offset = 0x4, fixed_abs, tag = 'smem constant byte address 0x4 - core index']
  #allocation1 [shape = 'u32[144,128]{1,0:T(1,128)}', space=vmem, size = 0x12000, scoped, tag = 'internal scratch']
  %s0 = inlined_call_operand.hbm [shape: f32[8,32], index: 0, kind: input, shape index: {}]
  %s1 = inlined_call_operand.hbm [shape: bf16[32,128], index: 1, kind: input, shape index: {}]
  %s2 = inlined_call_operand.hbm [shape: f32[1,128], index: 2, kind: input, shape index: {}]
  %s3 = inlined_call_operand.hbm [shape: bf16[128,256], index: 3, kind: input, shape index: {}]
  %s4 = inlined_call_operand.vmem [shape: f32[1,256], index: 4, kind: input, shape index: {}]
  %s5 = inlined_call_operand.hbm [shape: bf16[256,128], index: 5, kind: input, shape index: {}]
  %s6 = inlined_call_operand.hbm [shape: f32[1,128], index: 6, kind: input, shape index: {}]
  %s7 = inlined_call_operand.hbm [shape: bf16[128,128], index: 7, kind: input, shape index: {}]
  %s8 = inlined_call_operand.hbm [shape: f32[1,128], index: 8, kind: input, shape index: {}]
  %s9 = inlined_call_operand.hbm [shape: u32[8,128], index: 9, kind: input, shape index: {}]
  %s10 = inlined_call_operand.vmem [shape: u32[8,256], index: 10, kind: input, shape index: {}]
  %s11 = inlined_call_operand.hbm [shape: u32[8,128], index: 11, kind: input, shape index: {}]
  %s12 = inlined_call_operand.hbm [shape: f32[8,128], index: 12, kind: output, shape index: {}]
  %s13 = sld [smem:[#allocation0]]
  $region98: #{tpu_custom_call.1} parent=0
    _
  %s15 = ssub.s32 1, %s13
  %s16 = scalar_select 0, %s15, %s13
  $region1: #{tpu_custom_call.1} parent=0
    #allocation2 [shape = 'u8[4096]{0}', space=vmem, size = 0x1000, scoped, tag = 'input window, operand 0, single buffered']
    #allocation3 [shape = 's32[1]{0}', space=sflag, size = 0x4, scoped, tag = 'scoped memory for tpu_custom_call.1']
    #allocation4 [shape = 's32[1]{0}', space=sflag, size = 0x4, scoped, tag = 'scoped memory for tpu_custom_call.1']
    #allocation5 [shape = 'u8[8192]{0}', space=vmem, size = 0x2000, scoped, tag = 'input window, operand 1, single buffered']
    #allocation6 [shape = 's32[1]{0}', space=sflag, size = 0x4, scoped, tag = 'scoped memory for tpu_custom_call.1']
    #allocation7 [shape = 'u8[512]{0}', space=vmem, size = 0x400, scoped, tag = 'input window, operand 2, single buffered']
    #allocation8 [shape = 'u8[65536]{0}', space=vmem, size = 0x10000, scoped, tag = 'input window, operand 3, single buffered']
    #allocation9 [shape = 's32[1]{0}', space=sflag, size = 0x4, scoped, tag = 'scoped memory for tpu_custom_call.1']
    #allocation10 [shape = 'u8[65536]{0}', space=vmem, size = 0x10000, scoped, tag = 'input window, operand 5, single buffered']
    #allocation11 [shape = 'u8[512]{0}', space=vmem, size = 0x400, scoped, tag = 'input window, operand 6, single buffered']
    #allocation12 [shape = 's32[1]{0}', space=sflag, size = 0x4, scoped, tag = 'scoped memory for tpu_custom_call.1']
    #allocation13 [shape = 'u8[32768]{0}', space=vmem, size = 0x8000, scoped, tag = 'input window, operand 7, single buffered']
    #allocation14 [shape = 'u8[512]{0}', space=vmem, size = 0x400, scoped, tag = 'input window, operand 8, single buffered']
    #allocation15 [shape = 's32[1]{0}', space=sflag, size = 0x4, scoped, tag = 'scoped memory for tpu_custom_call.1']
    #allocation16 [shape = 'u8[4096]{0}', space=vmem, size = 0x1000, scoped, tag = 'input window, operand 9, single buffered']
    #allocation17 [shape = 'u8[4096]{0}', space=vmem, size = 0x1000, scoped, tag = 'input window, operand 11, single buffered']
    #allocation18 [shape = 's32[1]{0}', space=sflag, size = 0x4, scoped, tag = 'scoped memory for tpu_custom_call.1']
    #allocation19 [shape = 'u8[4096]{0}', space=vmem, size = 0x1000, scoped, tag = 'output window, operand 0, single buffered']
    %17 = vsyncpa [#allocation3], 0
    %18 = vsyncpa [#allocation6], 0
    %19 = vsyncpa [#allocation9], 0
    %20 = vsyncpa [#allocation12], 0
    %21 = vsyncpa [#allocation15], 0
    %22 = vsyncpa [#allocation18], 0
    %23 = vsyncpa [#allocation4], 0
    // Predicated region
    $region2: #{tpu_custom_call.1} parent=1 // pred_check
      _
    $region3: #{tpu_custom_call.1} parent=1 // pred_check_branch
      %25 = sbr.rel (0) target = $region5
    $region4: #{tpu_custom_call.1} parent=1 // pred_region
      %s27 = ssub.s32 128, 128
      %28 = vsyncadd [#allocation3], %s27
      %s30 = sshll.u32 [#allocation2], 4
      %s31 = int_to_ptr.vmem [resolvable:$true] %s30
      %33 = dma.hbm_to_vmem [thread:$0]  %s0, 128, %s31, [#allocation3]
    $region5: #{tpu_custom_call.1} parent=1 // pred_fallthru
      _
    // Predicated region
    $region6: #{tpu_custom_call.1} parent=1 // pred_check
      _
    $region7: #{tpu_custom_call.1} parent=1 // pred_check_branch
      %35 = sbr.rel (0) target = $region9
    $region8: #{tpu_custom_call.1} parent=1 // pred_region
      %s37 = ssub.s32 256, 256
      %38 = vsyncadd [#allocation6], %s37
      %s39 = sshll.u32 [#allocation5], 4
      %s40 = int_to_ptr.vmem [resolvable:$true] %s39
      %45 = dma.hbm_to_vmem [thread:$0]  %s1, 256, %s40, [#allocation6], 64, 64, 4
    $region9: #{tpu_custom_call.1} parent=1 // pred_fallthru
      _
    // Predicated region
    $region10: #{tpu_custom_call.1} parent=1 // pred_check
      _
    $region11: #{tpu_custom_call.1} parent=1 // pred_check_branch
      %47 = sbr.rel (0) target = $region13
    $region12: #{tpu_custom_call.1} parent=1 // pred_region
      %s49 = ssub.s32 16, 16
      %50 = vsyncadd [#allocation6], %s49
      %s52 = sshll.u32 [#allocation7], 4
      %s53 = int_to_ptr.vmem [resolvable:$true] %s52
      %55 = dma.hbm_to_vmem [thread:$0]  %s2, 16, %s53, [#allocation6]
    $region13: #{tpu_custom_call.1} parent=1 // pred_fallthru
      _
    // Predicated region
    $region14: #{tpu_custom_call.1} parent=1 // pred_check
      _
    $region15: #{tpu_custom_call.1} parent=1 // pred_check_branch
      %57 = sbr.rel (0) target = $region17
    $region16: #{tpu_custom_call.1} parent=1 // pred_region
      %s59 = ssub.s32 2048, 2048
      %60 = vsyncadd [#allocation9], %s59
      %s61 = sshll.u32 [#allocation8], 4
      %s62 = int_to_ptr.vmem [resolvable:$true] %s61
      %67 = dma.hbm_to_vmem [thread:$0]  %s3, 2048, %s62, [#allocation9], 128, 128, 8
    $region17: #{tpu_custom_call.1} parent=1 // pred_fallthru
      _
    // Predicated region
    $region18: #{tpu_custom_call.1} parent=1 // pred_check
      _
    $region19: #{tpu_custom_call.1} parent=1 // pred_check_branch
      %69 = sbr.rel (0) target = $region21
    $region20: #{tpu_custom_call.1} parent=1 // pred_region
      _
    $region21: #{tpu_custom_call.1} parent=1 // pred_fallthru
      _
    // Predicated region
    $region22: #{tpu_custom_call.1} parent=1 // pred_check
      _
    $region23: #{tpu_custom_call.1} parent=1 // pred_check_branch
      %71 = sbr.rel (0) target = $region25
    $region24: #{tpu_custom_call.1} parent=1 // pred_region
      %s73 = ssub.s32 2048, 2048
      %74 = vsyncadd [#allocation9], %s73
      %s75 = sshll.u32 [#allocation10], 4
      %s76 = int_to_ptr.vmem [resolvable:$true] %s75
      %81 = dma.hbm_to_vmem [thread:$0]  %s5, 2048, %s76, [#allocation9], 64, 64, 4
    $region25: #{tpu_custom_call.1} parent=1 // pred_fallthru
      _
    // Predicated region
    $region26: #{tpu_custom_call.1} parent=1 // pred_check
      _
    $region27: #{tpu_custom_call.1} parent=1 // pred_check_branch
      %83 = sbr.rel (0) target = $region29
    $region28: #{tpu_custom_call.1} parent=1 // pred_region
      %s85 = ssub.s32 16, 16
      %86 = vsyncadd [#allocation12], %s85
      %s88 = sshll.u32 [#allocation11], 4
      %s89 = int_to_ptr.vmem [resolvable:$true] %s88
      %91 = dma.hbm_to_vmem [thread:$0]  %s6, 16, %s89, [#allocation12]
    $region29: #{tpu_custom_call.1} parent=1 // pred_fallthru
      _
    // Predicated region
    $region30: #{tpu_custom_call.1} parent=1 // pred_check
      _
    $region31: #{tpu_custom_call.1} parent=1 // pred_check_branch
      %93 = sbr.rel (0) target = $region33
    $region32: #{tpu_custom_call.1} parent=1 // pred_region
      %s95 = ssub.s32 1024, 1024
      %96 = vsyncadd [#allocation12], %s95
      %s97 = sshll.u32 [#allocation13], 4
      %s98 = int_to_ptr.vmem [resolvable:$true] %s97
      %103 = dma.hbm_to_vmem [thread:$0]  %s7, 1024, %s98, [#allocation12], 64, 64, 4
    $region33: #{tpu_custom_call.1} parent=1 // pred_fallthru
      _
    // Predicated region
    $region34: #{tpu_custom_call.1} parent=1 // pred_check
      _
    $region35: #{tpu_custom_call.1} parent=1 // pred_check_branch
      %105 = sbr.rel (0) target = $region37
    $region36: #{tpu_custom_call.1} parent=1 // pred_region
      %s107 = ssub.s32 16, 16
      %108 = vsyncadd [#allocation15], %s107
      %s110 = sshll.u32 [#allocation14], 4
      %s111 = int_to_ptr.vmem [resolvable:$true] %s110
      %113 = dma.hbm_to_vmem [thread:$0]  %s8, 16, %s111, [#allocation15]
    $region37: #{tpu_custom_call.1} parent=1 // pred_fallthru
      _
    // Predicated region
    $region38: #{tpu_custom_call.1} parent=1 // pred_check
      _
    $region39: #{tpu_custom_call.1} parent=1 // pred_check_branch
      %115 = sbr.rel (0) target = $region41
    $region40: #{tpu_custom_call.1} parent=1 // pred_region
      %s117 = ssub.s32 128, 128
      %118 = vsyncadd [#allocation15], %s117
      %s120 = sshll.u32 [#allocation16], 4
      %s121 = int_to_ptr.vmem [resolvable:$true] %s120
      %123 = dma.hbm_to_vmem [thread:$0]  %s9, 128, %s121, [#allocation15]
    $region41: #{tpu_custom_call.1} parent=1 // pred_fallthru
      _
    // Predicated region
    $region42: #{tpu_custom_call.1} parent=1 // pred_check
      _
    $region43: #{tpu_custom_call.1} parent=1 // pred_check_branch
      %125 = sbr.rel (0) target = $region45
    $region44: #{tpu_custom_call.1} parent=1 // pred_region
      _
    $region45: #{tpu_custom_call.1} parent=1 // pred_fallthru
      _
    // Predicated region
    $region46: #{tpu_custom_call.1} parent=1 // pred_check
      _
    $region47: #{tpu_custom_call.1} parent=1 // pred_check_branch
      %127 = sbr.rel (0) target = $region49
    $region48: #{tpu_custom_call.1} parent=1 // pred_region
      %s129 = ssub.s32 128, 128
      %130 = vsyncadd [#allocation18], %s129
      %s132 = sshll.u32 [#allocation17], 4
      %s133 = int_to_ptr.vmem [resolvable:$true] %s132
      %135 = dma.hbm_to_vmem [thread:$0]  %s11, 128, %s133, [#allocation18]
    $region49: #{tpu_custom_call.1} parent=1 // pred_fallthru
      _
    // Predicated region
    $region50: #{tpu_custom_call.1} parent=1 // pred_check
      _
    $region51: #{tpu_custom_call.1} parent=1 // pred_check_branch
      %137 = sbr.rel (0) target = $region53
    $region52: #{tpu_custom_call.1} parent=1 // pred_region
      %138 = dma.done [#allocation3], 128
    $region53: #{tpu_custom_call.1} parent=1 // pred_fallthru
      _
    // Predicated region
    $region54: #{tpu_custom_call.1} parent=1 // pred_check
      _
    $region55: #{tpu_custom_call.1} parent=1 // pred_check_branch
      %140 = sbr.rel (0) target = $region57
    $region56: #{tpu_custom_call.1} parent=1 // pred_region
      %141 = dma.done [#allocation6], 256
    $region57: #{tpu_custom_call.1} parent=1 // pred_fallthru
      _
    // Predicated region
    $region58: #{tpu_custom_call.1} parent=1 // pred_check
      _
    $region59: #{tpu_custom_call.1} parent=1 // pred_check_branch
      %143 = sbr.rel (0) target = $region61
    $region60: #{tpu_custom_call.1} parent=1 // pred_region
      %144 = dma.done [#allocation6], 16
    $region61: #{tpu_custom_call.1} parent=1 // pred_fallthru
      _
    // Predicated region
    $region62: #{tpu_custom_call.1} parent=1 // pred_check
      _
    $region63: #{tpu_custom_call.1} parent=1 // pred_check_branch
      %146 = sbr.rel (0) target = $region65
    $region64: #{tpu_custom_call.1} parent=1 // pred_region
      %147 = dma.done [#allocation9], 2048
    $region65: #{tpu_custom_call.1} parent=1 // pred_fallthru
      _
    // Predicated region
    $region66: #{tpu_custom_call.1} parent=1 // pred_check
      _
    $region67: #{tpu_custom_call.1} parent=1 // pred_check_branch
      %149 = sbr.rel (0) target = $region69
    $region68: #{tpu_custom_call.1} parent=1 // pred_region
      %150 = dma.done [#allocation9], 2048
    $region69: #{tpu_custom_call.1} parent=1 // pred_fallthru
      _
    // Predicated region
    $region70: #{tpu_custom_call.1} parent=1 // pred_check
      _
    $region71: #{tpu_custom_call.1} parent=1 // pred_check_branch
      %152 = sbr.rel (0) target = $region73
    $region72: #{tpu_custom_call.1} parent=1 // pred_region
      %153 = dma.done [#allocation12], 16
    $region73: #{tpu_custom_call.1} parent=1 // pred_fallthru
      _
    // Predicated region
    $region74: #{tpu_custom_call.1} parent=1 // pred_check
      _
    $region75: #{tpu_custom_call.1} parent=1 // pred_check_branch
      %155 = sbr.rel (0) target = $region77
    $region76: #{tpu_custom_call.1} parent=1 // pred_region
      %156 = dma.done [#allocation12], 1024
    $region77: #{tpu_custom_call.1} parent=1 // pred_fallthru
      _
    // Predicated region
    $region78: #{tpu_custom_call.1} parent=1 // pred_check
      _
    $region79: #{tpu_custom_call.1} parent=1 // pred_check_branch
      %158 = sbr.rel (0) target = $region81
    $region80: #{tpu_custom_call.1} parent=1 // pred_region
      %159 = dma.done [#allocation15], 16
    $region81: #{tpu_custom_call.1} parent=1 // pred_fallthru
      _
    // Predicated region
    $region82: #{tpu_custom_call.1} parent=1 // pred_check
      _
    $region83: #{tpu_custom_call.1} parent=1 // pred_check_branch
      %161 = sbr.rel (0) target = $region85
    $region84: #{tpu_custom_call.1} parent=1 // pred_region
      %162 = dma.done [#allocation15], 128
    $region85: #{tpu_custom_call.1} parent=1 // pred_fallthru
      _
    // Predicated region
    $region86: #{tpu_custom_call.1} parent=1 // pred_check
      _
    $region87: #{tpu_custom_call.1} parent=1 // pred_check_branch
      %164 = sbr.rel (0) target = $region89
    $region88: #{tpu_custom_call.1} parent=1 // pred_region
      %165 = dma.done [#allocation18], 128
    $region89: #{tpu_custom_call.1} parent=1 // pred_fallthru
      _
    %v167 = vld [vmem:[#allocation2] sm:$0xff]
    %v168 = vpack.c.bf16 %v167, %v167
    %v169 = vld [vmem:[#allocation5] sm:$0xf]
    %v170 = vld [vmem:[#allocation5 + $0x4] sm:$0xf]
    %v171 = vld [vmem:[#allocation5 + $0x8] sm:$0xf]
    %v172 = vld [vmem:[#allocation5 + $0xc] sm:$0xf]
    %v173 = vld [vmem:[#allocation7] sm:$0x1]
    %v175 = vlaneseq
    %v176 = vshrl.u32 %v175, 7
    %v177 = vsub.s32 0, %v176
    %v178 = vrot.slane %v173, %v177
    %v184 = vunpack.c.l.b16 %v169
    %v185 = vunpack.c.l.b16 %v170
    %v186 = vunpack.c.l.b16 %v171
    %v187 = vunpack.c.l.b16 %v172
    %v188 = vpack.c.b16 %v185, %v184
    %v189 = vpack.c.b16 %v187, %v186
    %vm192 = vcmask 261120
    %v194 = vsel %vm192, %v168, 0
    %196 = vmatprep.subr.bf16.mxu0 0
    %197 = vmatpush1.bf16.msra.mxu0 0
    %198 = vmatprep.subr.bf16.mxu0 0
    %199 = vmatpush1.bf16.msra.mxu0 0
    %200 = vmatprep.subr.bf16.mxu0 0
    %201 = vmatpush1.bf16.msra.mxu0 0
    %202 = vmatprep.subr.bf16.mxu0 0
    %203 = vmatpush1.bf16.msra.mxu0 0
    %204 = vmatprep.subr.bf16.mxu0 0
    %205 = vmatpush1.bf16.msra.mxu0 0
    %206 = vmatprep.subr.bf16.mxu0 0
    %207 = vmatpush1.bf16.msra.mxu0 0
    %208 = vmatprep.subr.bf16.mxu0 0
    %209 = vmatpush1.bf16.msra.mxu0 %v189
    %210 = vmatprep.subr.bf16.mxu0 0
    %211 = vmatpush1.bf16.msra.mxu0 %v188
    %212 = vmatprep.subr.bf16.mxu0 0
    %213 = vmatpush2.bf16.msra.mxu0 0
    %214 = vmatprep.subr.bf16.mxu0 0
    %215 = vmatpush2.bf16.msra.mxu0 0
    %216 = vmatprep.subr.bf16.mxu0 0
    %217 = vmatpush2.bf16.msra.mxu0 0
    %218 = vmatprep.subr.bf16.mxu0 0
    %219 = vmatpush2.bf16.msra.mxu0 0
    %220 = vmatprep.subr.bf16.mxu0 0
    %221 = vmatpush2.bf16.msra.mxu0 0
    %222 = vmatprep.subr.bf16.mxu0 0
    %223 = vmatpush2.bf16.msra.mxu0 0
    %224 = vmatprep.subr.bf16.mxu0 0
    %225 = vmatpush2.bf16.msra.mxu0 0
    %226 = vmatprep.subr.bf16.mxu0 0
    %227 = vmatpush2.bf16.msra.mxu0 0
    %228 = vmatprep.mubr.bf16.mxu0 0
    %229 = vmatmul.mubr.bf16.gmra.mxu0 %v194
    %v230 = vpop.f32.mrf.mxu0
    %v231 = vadd.f32 %v178, %v230
    %v232 = vpop.f32.mrf.mxu0
    %v233 = vpop.f32.mrf.mxu0
    %v234 = vpop.f32.mrf.mxu0
    %235 = vdwg.mxu0
    %v236 = vmax.f32 %v231, 0.0
    %v237 = vld [vmem:[#allocation16] sm:$0xff]
    %vm238 = vcmp.ge.u32.totalorder %v237, 2147483648
    %v239 = vmul.f32 %v236, 2.0
    %v240 = vsel %vm238, %v239, 0.0
    %v241 = vpack.c.bf16 %v240, %v240
    %v242 = vld [vmem:[#allocation8] sm:$0xff]
    %v243 = vld [vmem:[#allocation8 + $0x8] sm:$0xff]
    %v244 = vld [vmem:[#allocation8 + $0x10] sm:$0xff]
    %v245 = vld [vmem:[#allocation8 + $0x18] sm:$0xff]
    %v246 = vld [vmem:[#allocation8 + $0x20] sm:$0xff]
    %v247 = vld [vmem:[#allocation8 + $0x28] sm:$0xff]
    %v248 = vld [vmem:[#allocation8 + $0x30] sm:$0xff]
    %v249 = vld [vmem:[#allocation8 + $0x38] sm:$0xff]
    %v250 = vld [vmem:[#allocation8 + $0x40] sm:$0xff]
    %v251 = vld [vmem:[#allocation8 + $0x48] sm:$0xff]
    %v252 = vld [vmem:[#allocation8 + $0x50] sm:$0xff]
    %v253 = vld [vmem:[#allocation8 + $0x58] sm:$0xff]
    %v254 = vld [vmem:[#allocation8 + $0x60] sm:$0xff]
    %v255 = vld [vmem:[#allocation8 + $0x68] sm:$0xff]
    %v256 = vld [vmem:[#allocation8 + $0x70] sm:$0xff]
    %v257 = vld [vmem:[#allocation8 + $0x78] sm:$0xff]
    %v258 = vld [vmem:[%s4] sm:$0x3]
    %v260 = vlaneseq
    %v261 = vshrl.u32 %v260, 7
    %v262 = vsub.s32 0, %v261
    %v263 = vrot.slane %v258, %v262
    %v264 = vlaneseq
    %v265 = vshrl.u32 %v264, 7
    %v266 = vsub.s32 1, %v265
    %v267 = vrot.slane %v258, %v266
    %v286 = vunpack.c.l.b16 %v242
    %v287 = vunpack.c.h.b16 %v242
    %v288 = vunpack.c.l.b16 %v243
    %v289 = vunpack.c.h.b16 %v243
    %v290 = vunpack.c.l.b16 %v244
    %v291 = vunpack.c.h.b16 %v244
    %v292 = vunpack.c.l.b16 %v245
    %v293 = vunpack.c.h.b16 %v245
    %v294 = vunpack.c.l.b16 %v246
    %v295 = vunpack.c.h.b16 %v246
    %v296 = vunpack.c.l.b16 %v247
    %v297 = vunpack.c.h.b16 %v247
    %v298 = vunpack.c.l.b16 %v248
    %v299 = vunpack.c.h.b16 %v248
    %v300 = vunpack.c.l.b16 %v249
    %v301 = vunpack.c.h.b16 %v249
    %v302 = vunpack.c.l.b16 %v250
    %v303 = vunpack.c.h.b16 %v250
    %v304 = vunpack.c.l.b16 %v251
    %v305 = vunpack.c.h.b16 %v251
    %v306 = vunpack.c.l.b16 %v252
    %v307 = vunpack.c.h.b16 %v252
    %v308 = vunpack.c.l.b16 %v253
    %v309 = vunpack.c.h.b16 %v253
    %v310 = vunpack.c.l.b16 %v254
    %v311 = vunpack.c.h.b16 %v254
    %v312 = vunpack.c.l.b16 %v255
    %v313 = vunpack.c.h.b16 %v255
    %v314 = vunpack.c.l.b16 %v256
    %v315 = vunpack.c.h.b16 %v256
    %v316 = vunpack.c.l.b16 %v257
    %v317 = vunpack.c.h.b16 %v257
    %v318 = vpack.c.b16 %v288, %v286
    %v319 = vpack.c.b16 %v289, %v287
    %v320 = vpack.c.b16 %v292, %v290
    %v321 = vpack.c.b16 %v293, %v291
    %v322 = vpack.c.b16 %v296, %v294
    %v323 = vpack.c.b16 %v297, %v295
    %v324 = vpack.c.b16 %v300, %v298
    %v325 = vpack.c.b16 %v301, %v299
    %v326 = vpack.c.b16 %v304, %v302
    %v327 = vpack.c.b16 %v305, %v303
    %v328 = vpack.c.b16 %v308, %v306
    %v329 = vpack.c.b16 %v309, %v307
    %v330 = vpack.c.b16 %v312, %v310
    %v331 = vpack.c.b16 %v313, %v311
    %v332 = vpack.c.b16 %v316, %v314
    %v333 = vpack.c.b16 %v317, %v315
    %350 = vmatprep.subr.bf16.mxu0 %v333
    %351 = vmatpush1.bf16.msra.mxu0 %v332
    %352 = vmatprep.subr.bf16.mxu0 %v331
    %353 = vmatpush1.bf16.msra.mxu0 %v330
    %354 = vmatprep.subr.bf16.mxu0 %v329
    %355 = vmatpush1.bf16.msra.mxu0 %v328
    %356 = vmatprep.subr.bf16.mxu0 %v327
    %357 = vmatpush1.bf16.msra.mxu0 %v326
    %358 = vmatprep.subr.bf16.mxu0 %v325
    %359 = vmatpush1.bf16.msra.mxu0 %v324
    %360 = vmatprep.subr.bf16.mxu0 %v323
    %361 = vmatpush1.bf16.msra.mxu0 %v322
    %362 = vmatprep.subr.bf16.mxu0 %v321
    %363 = vmatpush1.bf16.msra.mxu0 %v320
    %364 = vmatprep.subr.bf16.mxu0 %v319
    %365 = vmatpush1.bf16.msra.mxu0 %v318
    %366 = vmatprep.subr.bf16.mxu0 0
    %367 = vmatpush2.bf16.msra.mxu0 0
    %368 = vmatprep.subr.bf16.mxu0 0
    %369 = vmatpush2.bf16.msra.mxu0 0
    %370 = vmatprep.subr.bf16.mxu0 0
    %371 = vmatpush2.bf16.msra.mxu0 0
    %372 = vmatprep.subr.bf16.mxu0 0
    %373 = vmatpush2.bf16.msra.mxu0 0
    %374 = vmatprep.subr.bf16.mxu0 0
    %375 = vmatpush2.bf16.msra.mxu0 0
    %376 = vmatprep.subr.bf16.mxu0 0
    %377 = vmatpush2.bf16.msra.mxu0 0
    %378 = vmatprep.subr.bf16.mxu0 0
    %379 = vmatpush2.bf16.msra.mxu0 0
    %380 = vmatprep.subr.bf16.mxu0 0
    %381 = vmatpush2.bf16.msra.mxu0 0
    %382 = vmatprep.mubr.bf16.mxu0 0
    %383 = vmatmul.mubr.bf16.gmra.mxu0 %v241
    %v384 = vpop.f32.mrf.mxu0
    %v385 = vadd.f32 %v263, %v384
    %v386 = vpop.f32.mrf.mxu0
    %v387 = vadd.f32 %v267, %v386
    %v388 = vpop.f32.mrf.mxu0
    %v389 = vpop.f32.mrf.mxu0
    %390 = vdwg.mxu0
    %v391 = vmax.f32 %v385, 0.0
    %v392 = vmax.f32 %v387, 0.0
    %v393 = vld [vmem:[%s10] sm:$0xff]
    %v394 = vld [vmem:[%s10 + $0x8] sm:$0xff]
    %vm395 = vcmp.ge.u32.totalorder %v393, 2147483648
    %vm396 = vcmp.ge.u32.totalorder %v394, 2147483648
    %v397 = vmul.f32 %v391, 2.0
    %v398 = vmul.f32 %v392, 2.0
    %v399 = vsel %vm395, %v397, 0.0
    %v400 = vsel %vm396, %v398, 0.0
    %v401 = vpack.c.bf16 %v399, %v399
    %v402 = vpack.c.bf16 %v400, %v400
    %v403 = vld [vmem:[#allocation10] sm:$0xf]
    %v404 = vld [vmem:[#allocation10 + $0x4] sm:$0xf]
    %v405 = vld [vmem:[#allocation10 + $0x8] sm:$0xf]
    %v406 = vld [vmem:[#allocation10 + $0xc] sm:$0xf]
    %v407 = vld [vmem:[#allocation10 + $0x10] sm:$0xf]
    %v408 = vld [vmem:[#allocation10 + $0x14] sm:$0xf]
    %v409 = vld [vmem:[#allocation10 + $0x18] sm:$0xf]
    %v410 = vld [vmem:[#allocation10 + $0x1c] sm:$0xf]
    %v411 = vld [vmem:[#allocation10 + $0x20] sm:$0xf]
    %v412 = vld [vmem:[#allocation10 + $0x24] sm:$0xf]
    %v413 = vld [vmem:[#allocation10 + $0x28] sm:$0xf]
    %v414 = vld [vmem:[#allocation10 + $0x2c] sm:$0xf]
    %v415 = vld [vmem:[#allocation10 + $0x30] sm:$0xf]
    %v416 = vld [vmem:[#allocation10 + $0x34] sm:$0xf]
    %v417 = vld [vmem:[#allocation10 + $0x38] sm:$0xf]
    %v418 = vld [vmem:[#allocation10 + $0x3c] sm:$0xf]
    %v419 = vld [vmem:[#allocation10 + $0x40] sm:$0xf]
    %v420 = vld [vmem:[#allocation10 + $0x44] sm:$0xf]
    %v421 = vld [vmem:[#allocation10 + $0x48] sm:$0xf]
    %v422 = vld [vmem:[#allocation10 + $0x4c] sm:$0xf]
    %v423 = vld [vmem:[#allocation10 + $0x50] sm:$0xf]
    %v424 = vld [vmem:[#allocation10 + $0x54] sm:$0xf]
    %v425 = vld [vmem:[#allocation10 + $0x58] sm:$0xf]
    %v426 = vld [vmem:[#allocation10 + $0x5c] sm:$0xf]
    %v427 = vld [vmem:[#allocation10 + $0x60] sm:$0xf]
    %v428 = vld [vmem:[#allocation10 + $0x64] sm:$0xf]
    %v429 = vld [vmem:[#allocation10 + $0x68] sm:$0xf]
    %v430 = vld [vmem:[#allocation10 + $0x6c] sm:$0xf]
    %v431 = vld [vmem:[#allocation10 + $0x70] sm:$0xf]
    %v432 = vld [vmem:[#allocation10 + $0x74] sm:$0xf]
    %v433 = vld [vmem:[#allocation10 + $0x78] sm:$0xf]
    %v434 = vld [vmem:[#allocation10 + $0x7c] sm:$0xf]
    %v435 = vld [vmem:[#allocation11] sm:$0x1]
    %v437 = vlaneseq
    %v438 = vshrl.u32 %v437, 7
    %v439 = vsub.s32 0, %v438
    %v440 = vrot.slane %v435, %v439
    %v474 = vunpack.c.l.b16 %v403
    %v475 = vunpack.c.l.b16 %v404
    %v476 = vunpack.c.l.b16 %v405
    %v477 = vunpack.c.l.b16 %v406
    %v478 = vunpack.c.l.b16 %v407
    %v479 = vunpack.c.l.b16 %v408
    %v480 = vunpack.c.l.b16 %v409
    %v481 = vunpack.c.l.b16 %v410
    %v482 = vunpack.c.l.b16 %v411
    %v483 = vunpack.c.l.b16 %v412
    %v484 = vunpack.c.l.b16 %v413
    %v485 = vunpack.c.l.b16 %v414
    %v486 = vunpack.c.l.b16 %v415
    %v487 = vunpack.c.l.b16 %v416
    %v488 = vunpack.c.l.b16 %v417
    %v489 = vunpack.c.l.b16 %v418
    %v490 = vunpack.c.l.b16 %v419
    %v491 = vunpack.c.l.b16 %v420
    %v492 = vunpack.c.l.b16 %v421
    %v493 = vunpack.c.l.b16 %v422
    %v494 = vunpack.c.l.b16 %v423
    %v495 = vunpack.c.l.b16 %v424
    %v496 = vunpack.c.l.b16 %v425
    %v497 = vunpack.c.l.b16 %v426
    %v498 = vunpack.c.l.b16 %v427
    %v499 = vunpack.c.l.b16 %v428
    %v500 = vunpack.c.l.b16 %v429
    %v501 = vunpack.c.l.b16 %v430
    %v502 = vunpack.c.l.b16 %v431
    %v503 = vunpack.c.l.b16 %v432
    %v504 = vunpack.c.l.b16 %v433
    %v505 = vunpack.c.l.b16 %v434
    %v506 = vpack.c.b16 %v475, %v474
    %v507 = vpack.c.b16 %v477, %v476
    %v508 = vpack.c.b16 %v479, %v478
    %v509 = vpack.c.b16 %v481, %v480
    %v510 = vpack.c.b16 %v483, %v482
    %v511 = vpack.c.b16 %v485, %v484
    %v512 = vpack.c.b16 %v487, %v486
    %v513 = vpack.c.b16 %v489, %v488
    %v514 = vpack.c.b16 %v491, %v490
    %v515 = vpack.c.b16 %v493, %v492
    %v516 = vpack.c.b16 %v495, %v494
    %v517 = vpack.c.b16 %v497, %v496
    %v518 = vpack.c.b16 %v499, %v498
    %v519 = vpack.c.b16 %v501, %v500
    %v520 = vpack.c.b16 %v503, %v502
    %v521 = vpack.c.b16 %v505, %v504
    %538 = vmatprep.subr.bf16.mxu0 0
    %539 = vmatpush1.bf16.msra.mxu0 %v513
    %540 = vmatprep.subr.bf16.mxu0 0
    %541 = vmatpush1.bf16.msra.mxu0 %v512
    %542 = vmatprep.subr.bf16.mxu0 0
    %543 = vmatpush1.bf16.msra.mxu0 %v511
    %544 = vmatprep.subr.bf16.mxu0 0
    %545 = vmatpush1.bf16.msra.mxu0 %v510
    %546 = vmatprep.subr.bf16.mxu0 0
    %547 = vmatpush1.bf16.msra.mxu0 %v509
    %548 = vmatprep.subr.bf16.mxu0 0
    %549 = vmatpush1.bf16.msra.mxu0 %v508
    %550 = vmatprep.subr.bf16.mxu0 0
    %551 = vmatpush1.bf16.msra.mxu0 %v507
    %552 = vmatprep.subr.bf16.mxu0 0
    %553 = vmatpush1.bf16.msra.mxu0 %v506
    %554 = vmatprep.subr.bf16.mxu0 0
    %555 = vmatpush2.bf16.msra.mxu0 %v521
    %556 = vmatprep.subr.bf16.mxu0 0
    %557 = vmatpush2.bf16.msra.mxu0 %v520
    %558 = vmatprep.subr.bf16.mxu0 0
    %559 = vmatpush2.bf16.msra.mxu0 %v519
    %560 = vmatprep.subr.bf16.mxu0 0
    %561 = vmatpush2.bf16.msra.mxu0 %v518
    %562 = vmatprep.subr.bf16.mxu0 0
    %563 = vmatpush2.bf16.msra.mxu0 %v517
    %564 = vmatprep.subr.bf16.mxu0 0
    %565 = vmatpush2.bf16.msra.mxu0 %v516
    %566 = vmatprep.subr.bf16.mxu0 0
    %567 = vmatpush2.bf16.msra.mxu0 %v515
    %568 = vmatprep.subr.bf16.mxu0 0
    %569 = vmatpush2.bf16.msra.mxu0 %v514
    %570 = vmatprep.mubr.bf16.mxu0 %v402
    %571 = vmatmul.mubr.bf16.gmra.mxu0 %v401
    %v572 = vpop.f32.mrf.mxu0
    %v573 = vadd.f32 %v440, %v572
    %v574 = vpop.f32.mrf.mxu0
    %v575 = vpop.f32.mrf.mxu0
    %v576 = vpop.f32.mrf.mxu0
    %577 = vdwg.mxu0
    %v578 = vmax.f32 %v573, 0.0
    %v579 = vld [vmem:[#allocation17] sm:$0xff]
    %vm580 = vcmp.ge.u32.totalorder %v579, 2147483648
    %v581 = vmul.f32 %v578, 2.0
    %v582 = vsel %vm580, %v581, 0.0
    %v583 = vpack.c.bf16 %v582, %v582
    %v584 = vld [vmem:[#allocation13] sm:$0xf]
    %v585 = vld [vmem:[#allocation13 + $0x4] sm:$0xf]
    %v586 = vld [vmem:[#allocation13 + $0x8] sm:$0xf]
    %v587 = vld [vmem:[#allocation13 + $0xc] sm:$0xf]
    %v588 = vld [vmem:[#allocation13 + $0x10] sm:$0xf]
    %v589 = vld [vmem:[#allocation13 + $0x14] sm:$0xf]
    %v590 = vld [vmem:[#allocation13 + $0x18] sm:$0xf]
    %v591 = vld [vmem:[#allocation13 + $0x1c] sm:$0xf]
    %v592 = vld [vmem:[#allocation13 + $0x20] sm:$0xf]
    %v593 = vld [vmem:[#allocation13 + $0x24] sm:$0xf]
    %v594 = vld [vmem:[#allocation13 + $0x28] sm:$0xf]
    %v595 = vld [vmem:[#allocation13 + $0x2c] sm:$0xf]
    %v596 = vld [vmem:[#allocation13 + $0x30] sm:$0xf]
    %v597 = vld [vmem:[#allocation13 + $0x34] sm:$0xf]
    %v598 = vld [vmem:[#allocation13 + $0x38] sm:$0xf]
    %v599 = vld [vmem:[#allocation13 + $0x3c] sm:$0xf]
    %v600 = vld [vmem:[#allocation14] sm:$0x1]
    %v602 = vlaneseq
    %v603 = vshrl.u32 %v602, 7
    %v604 = vsub.s32 0, %v603
    %v605 = vrot.slane %v600, %v604
    %v623 = vunpack.c.l.b16 %v584
    %v624 = vunpack.c.l.b16 %v585
    %v625 = vunpack.c.l.b16 %v586
    %v626 = vunpack.c.l.b16 %v587
    %v627 = vunpack.c.l.b16 %v588
    %v628 = vunpack.c.l.b16 %v589
    %v629 = vunpack.c.l.b16 %v590
    %v630 = vunpack.c.l.b16 %v591
    %v631 = vunpack.c.l.b16 %v592
    %v632 = vunpack.c.l.b16 %v593
    %v633 = vunpack.c.l.b16 %v594
    %v634 = vunpack.c.l.b16 %v595
    %v635 = vunpack.c.l.b16 %v596
    %v636 = vunpack.c.l.b16 %v597
    %v637 = vunpack.c.l.b16 %v598
    %v638 = vunpack.c.l.b16 %v599
    %v639 = vpack.c.b16 %v624, %v623
    %v640 = vpack.c.b16 %v626, %v625
    %v641 = vpack.c.b16 %v628, %v627
    %v642 = vpack.c.b16 %v630, %v629
    %v643 = vpack.c.b16 %v632, %v631
    %v644 = vpack.c.b16 %v634, %v633
    %v645 = vpack.c.b16 %v636, %v635
    %v646 = vpack.c.b16 %v638, %v637
    %655 = vmatprep.subr.bf16.mxu0 0
    %656 = vmatpush1.bf16.msra.mxu0 %v646
    %657 = vmatprep.subr.bf16.mxu0 0
    %658 = vmatpush1.bf16.msra.mxu0 %v645
    %659 = vmatprep.subr.bf16.mxu0 0
    %660 = vmatpush1.bf16.msra.mxu0 %v644
    %661 = vmatprep.subr.bf16.mxu0 0
    %662 = vmatpush1.bf16.msra.mxu0 %v643
    %663 = vmatprep.subr.bf16.mxu0 0
    %664 = vmatpush1.bf16.msra.mxu0 %v642
    %665 = vmatprep.subr.bf16.mxu0 0
    %666 = vmatpush1.bf16.msra.mxu0 %v641
    %667 = vmatprep.subr.bf16.mxu0 0
    %668 = vmatpush1.bf16.msra.mxu0 %v640
    %669 = vmatprep.subr.bf16.mxu0 0
    %670 = vmatpush1.bf16.msra.mxu0 %v639
    %671 = vmatprep.subr.bf16.mxu0 0
    %672 = vmatpush2.bf16.msra.mxu0 0
    %673 = vmatprep.subr.bf16.mxu0 0
    %674 = vmatpush2.bf16.msra.mxu0 0
    %675 = vmatprep.subr.bf16.mxu0 0
    %676 = vmatpush2.bf16.msra.mxu0 0
    %677 = vmatprep.subr.bf16.mxu0 0
    %678 = vmatpush2.bf16.msra.mxu0 0
    %679 = vmatprep.subr.bf16.mxu0 0
    %680 = vmatpush2.bf16.msra.mxu0 0
    %681 = vmatprep.subr.bf16.mxu0 0
    %682 = vmatpush2.bf16.msra.mxu0 0
    %683 = vmatprep.subr.bf16.mxu0 0
    %684 = vmatpush2.bf16.msra.mxu0 0
    %685 = vmatprep.subr.bf16.mxu0 0
    %686 = vmatpush2.bf16.msra.mxu0 0
    %687 = vmatprep.mubr.bf16.mxu0 0
    %688 = vmatmul.mubr.bf16.gmra.mxu0 %v583
    %v689 = vpop.f32.mrf.mxu0
    %v690 = vadd.f32 %v605, %v689
    %v691 = vpop.f32.mrf.mxu0
    %v692 = vpop.f32.mrf.mxu0
    %v693 = vpop.f32.mrf.mxu0
    %694 = vdwg.mxu0
    %v695 = vxor.u32 %v690, 2147483648
    %v696 = vmul.f32 %v695, 1.442695
    %v697 = vpow.pop %v696
    %v698 = vadd.f32 %v697, 1.0
    %v699 = vrcp.pop %v698
    %v700 = vmul.f32 1.0, %v699
    %701 = vst [vmem:[#allocation19] sm:$0xff] %v700
    // Predicated region
    $region90: #{tpu_custom_call.1} parent=1 // pred_check
      _
    $region91: #{tpu_custom_call.1} parent=1 // pred_check_branch
      %703 = sbr.rel (0) target = $region93
    $region92: #{tpu_custom_call.1} parent=1 // pred_region
      %s705 = ssub.s32 128, 128
      %706 = vsyncadd [#allocation4], %s705
      %s708 = sshll.u32 [#allocation19], 4
      %s709 = int_to_ptr.vmem [resolvable:$true] %s708
      %711 = dma.vmem_to_hbm [thread:$0]  %s709, 128, %s12, [#allocation4]
    $region93: #{tpu_custom_call.1} parent=1 // pred_fallthru
      _
    // Predicated region
    $region94: #{tpu_custom_call.1} parent=1 // pred_check
      _
    $region95: #{tpu_custom_call.1} parent=1 // pred_check_branch
      %713 = sbr.rel (0) target = $region97
    $region96: #{tpu_custom_call.1} parent=1 // pred_region
      %714 = dma.done [#allocation4], 128
    $region97: #{tpu_custom_call.1} parent=1 // pred_fallthru
      _
    %715 = vsyncpa [#allocation3], 1
    %716 = vsyncpa [#allocation6], 1
    %717 = vsyncpa [#allocation9], 1
    %718 = vsyncpa [#allocation12], 1
    %719 = vsyncpa [#allocation15], 1
    %720 = vsyncpa [#allocation18], 1
    %721 = vsyncpa [#allocation4], 1

</llo_original>
